<compile_context>
chip_gen: v5e
topology: v5e:2x2
jax: 0.10.0
libtpu: 0.0.40
codegen_flags: <defaults>
</compile_context>

<pallas_src>
import jax
import jax.numpy as jnp
from jax.experimental import pallas as pl
from jax.experimental.pallas import tpu as pltpu

LANE = 128
SUBLANE = 8
MAX_BATCH_TILE = 512


def _mish(x):
    # mish(x) = x * tanh(softplus(x)).  With u = e^x (clamped so u^2 stays
    # finite in f32), tanh(log1p(u)) == (u^2 + 2u) / (u^2 + 2u + 2):
    # one EUP exp + one approximate EUP reciprocal + cheap VPU ops.
    u = jnp.exp(jnp.minimum(x, 20.0))
    n = u * (u + 2.0)
    return x * n * pl.reciprocal(n + 2.0, approx=True)


def _classifier_kernel(x_ref, w1_ref, b1_ref, w2_ref, b2_ref, o_ref):
    """Linear(H,H) -> Mish -> Linear(H,Cp) on one (tb, H) tile of CLS rows.

    x_ref : (tb, H)  f32   CLS hidden rows (DMA'd straight out of (B, S*H))
    w1_ref: (H, H)   bf16  first linear, stored (in, out)
    b1_ref: (1, H)   f32
    w2_ref: (H, Cp)  bf16  second linear, zero-padded to Cp = 128 lanes
    b2_ref: (1, Cp)  f32
    o_ref : (tb, Cp) f32   lane-dense output
    """
    # bf16 matmul operands, f32 accumulation.  (Kept intentionally: ~1e-2
    # relative logit error vs the f32 PyTorch head; drop the casts if exact
    # f32 fidelity is required.)
    x = x_ref[...].astype(jnp.bfloat16)
    h = jnp.dot(x, w1_ref[...], preferred_element_type=jnp.float32) + b1_ref[...]
    h = _mish(h)  # f32 activation math
    o_ref[...] = (
        jnp.dot(h.astype(jnp.bfloat16), w2_ref[...],
                preferred_element_type=jnp.float32)
        + b2_ref[...]
    ).astype(o_ref.dtype)


def _pick_batch_tile(B, max_tb=MAX_BATCH_TILE):
    """Batch tile: large enough to amortize the ~0.35us/step overhead and the
    MXU fill, small enough to keep double-buffered activations to a few MiB,
    and (for B > 64) an even number of tiles so a 2-TensorCore part (v7x)
    gets a shardable parallel grid."""
    if B <= 64:
        return B  # launch-latency bound; a single step is optimal
    n_tiles = max(2, pl.cdiv(B, max_tb))
    if n_tiles % 2:
        n_tiles += 1  # even grid length -> both TCs busy on v7x
    tb = pl.cdiv(pl.cdiv(B, n_tiles), SUBLANE) * SUBLANE
    return min(max_tb, tb)


def prepare_head_params(params):
    """One-time packing of classifier params: bf16 weights, lane-padded N."""
    H, C = params["w2"].shape
    c_pad = max(LANE, pl.cdiv(C, LANE) * LANE)  # stays exactly 128 for C <= 128
    w2 = jnp.zeros((H, c_pad), jnp.float32).at[:, :C].set(params["w2"])
    b2 = jnp.zeros((c_pad,), jnp.float32).at[:C].set(params["b2"])
    return {
        "w1": params["w1"].astype(jnp.bfloat16),
        "b1": params["b1"].reshape(1, H).astype(jnp.float32),
        "w2": w2.astype(jnp.bfloat16),
        "b2": b2.reshape(1, c_pad),
        "n_classes": C,
    }


def emo_classifier_head(hidden_states, head):
    """hidden_states: (B, S, H) last hidden state; returns (B, C) logits."""
    B, S, H = hidden_states.shape
    c_pad = head["w2"].shape[1]
    tb = _pick_batch_tile(B)

    # Free row-major view (default XLA layout): the CLS vector of batch row b
    # is columns [0, H) of row b.  If a non-default producer layout ever
    # forces a copy here, switch to a 3-D BlockSpec over (B, S, H) instead.
    x2d = hidden_states.reshape(B, S * H)

    resident = dict(pipeline_mode=pl.Buffered(1))  # fetched once; no 2nd buffer

    out = pl.pallas_call(
        _classifier_kernel,
        out_shape=jax.ShapeDtypeStruct((B, c_pad), jnp.float32),
        grid=(pl.cdiv(B, tb),),
        in_specs=[
            pl.BlockSpec((tb, H), lambda i: (i, 0)),            # CLS rows only
            pl.BlockSpec((H, H), lambda i: (0, 0), **resident),  # weights stay
            pl.BlockSpec((1, H), lambda i: (0, 0), **resident),  # VMEM-resident
            pl.BlockSpec((H, c_pad), lambda i: (0, 0), **resident),
            pl.BlockSpec((1, c_pad), lambda i: (0, 0), **resident),
        ],
        out_specs=pl.BlockSpec((tb, c_pad), lambda i: (i, 0)),
        compiler_params=pltpu.CompilerParams(
            dimension_semantics=("parallel",),
        ),
    )(x2d, head["w1"], head["b1"], head["w2"], head["b2"])
    return out[:, : head["n_classes"]]


def synthetic_base_model(X, attention_mask, emb_table):
    """Deterministic stand-in for `base_model`: embedding lookup masked by the
    attention mask. Returns a tuple like HF models: (last_hidden_state,)."""
    hidden = emb_table[X]                                    # (B, S, H)
    hidden = hidden * attention_mask[..., None].astype(hidden.dtype)
    return (hidden,)


def emo_model_forward(input_, params, head):
    X, attention_mask = input_
    hidden_states = synthetic_base_model(X, attention_mask, params["emb"])
    return emo_classifier_head(hidden_states[0], head)


def init_params(key, vocab_size, hidden, n_classes):
    k_emb, k_w1, k_w2 = jax.random.split(key, 3)
    # Linear weights: normal(mean=0, std=0.02); biases zero (as in __init__).
    # Stored transposed (in_features, out_features) so the kernel does x @ W.
    return {
        "emb": jax.random.normal(k_emb, (vocab_size, hidden), jnp.float32) * 0.02,
        "w1": jax.random.normal(k_w1, (hidden, hidden), jnp.float32) * 0.02,
        "b1": jnp.zeros((hidden,), jnp.float32),
        "w2": jax.random.normal(k_w2, (hidden, n_classes), jnp.float32) * 0.02,
        "b2": jnp.zeros((n_classes,), jnp.float32),
    }


def _reference_logits_bf16(X, attention_mask, params):
    """Same math in plain JAX, with matmul operands rounded to bf16 exactly as
    the kernel does (accumulation stays f32); exact f32 mish."""
    cls = synthetic_base_model(X, attention_mask, params["emb"])[0][:, 0, :]
    to_bf = lambda a: a.astype(jnp.bfloat16).astype(jnp.float32)
    h = to_bf(cls) @ to_bf(params["w1"]) + params["b1"]
    h = h * jnp.tanh(jax.nn.softplus(h))
    return to_bf(h) @ to_bf(params["w2"]) + params["b2"]


def _reference_logits_f32(X, attention_mask, params):
    cls = synthetic_base_model(X, attention_mask, params["emb"])[0][:, 0, :]
    h = cls @ params["w1"] + params["b1"]
    h = h * jnp.tanh(jax.nn.softplus(h))
    return h @ params["w2"] + params["b2"]


if __name__ == "__main__":
    # seq, hidden (base_model_output_size), classes, vocab
    S, H, C, V = 8, 256, 8, 32

    key = jax.random.PRNGKey(0)
    k_params, k_data = jax.random.split(key, 2)
    params = init_params(k_params, V, H, C)
    head = prepare_head_params(params)

    # B = 8   : single tile, single grid step
    # B = 13  : ragged batch (B % 8 != 0), tb == B (full-dim block)
    # B = 200 : two-tile even grid with a clamped partial last block
    for B in (8, 13, 200):
        k_data, k_x = jax.random.split(k_data)
        X = jax.random.randint(k_x, (B, S), 0, V, dtype=jnp.int32)
        attention_mask = jnp.ones((B, S), jnp.int32)

        out = emo_model_forward((X, attention_mask), params, head)
        out = jax.block_until_ready(out)
        assert out.shape == (B, C)

        ref = _reference_logits_bf16(X, attention_mask, params)
        err = float(jnp.max(jnp.abs(out - ref)))
        assert jnp.allclose(out, ref, atol=5e-5, rtol=1e-2), (B, err)

        # Loose sanity check against the full-f32 formulation.
        ref32 = _reference_logits_f32(X, attention_mask, params)
        assert jnp.allclose(out, ref32, atol=5e-4, rtol=5e-2), B

    print("KERNEL_OK")
</pallas_src>

<mosaic_0001>
module attributes {stable_mosaic.version = 11 : i64} {
  func.func @_classifier_kernel(%arg0: i32, %arg1: memref<8x256xf32, #tpu.memory_space<vmem>>, %arg2: memref<256x256xbf16, #tpu.memory_space<vmem>>, %arg3: memref<1x256xf32, #tpu.memory_space<vmem>>, %arg4: memref<256x128xbf16, #tpu.memory_space<vmem>>, %arg5: memref<1x128xf32, #tpu.memory_space<vmem>>, %arg6: memref<8x128xf32, #tpu.memory_space<vmem>>) attributes {dimension_semantics = [#tpu.dimension_semantics<parallel>], iteration_bounds = array<i64: 1>, scalar_prefetch = 0 : i64, scratch_operands = 0 : i64, tpu.core_type = #tpu.core_type<tc>, window_params = [{transform_indices = @transform_0, window_bounds = array<i64: 8, 256>}, {pipeline_mode = #tpu.pipeline_mode<synchronous>, transform_indices = @transform_1, window_bounds = array<i64: 256, 256>}, {pipeline_mode = #tpu.pipeline_mode<synchronous>, transform_indices = @transform_2, window_bounds = array<i64: 1, 256>}, {pipeline_mode = #tpu.pipeline_mode<synchronous>, transform_indices = @transform_3, window_bounds = array<i64: 256, 128>}, {pipeline_mode = #tpu.pipeline_mode<synchronous>, transform_indices = @transform_4, window_bounds = array<i64: 1, 128>}, {transform_indices = @transform_5, window_bounds = array<i64: 8, 128>}]} {
    %c0 = arith.constant 0 : index
    %c0_0 = arith.constant 0 : index
    %0 = vector.load %arg1[%c0, %c0_0] : memref<8x256xf32, #tpu.memory_space<vmem>>, vector<8x256xf32>
    %1 = arith.truncf %0 : vector<8x256xf32> to vector<8x256xbf16>
    %c0_1 = arith.constant 0 : index
    %c0_2 = arith.constant 0 : index
    %2 = vector.load %arg2[%c0_1, %c0_2] : memref<256x256xbf16, #tpu.memory_space<vmem>>, vector<256x256xbf16>
    %cst = arith.constant dense<0.000000e+00> : vector<8x256xf32>
    %3 = tpu.matmul %1, %2, %cst {dimension_numbers = #tpu.dot_dimension_numbers<[1], [0], [0], [1], [0, 0, 1, 1], [], []>} : vector<8x256xbf16>, vector<256x256xbf16>, vector<8x256xf32> -> vector<8x256xf32>
    %c0_3 = arith.constant 0 : index
    %c0_4 = arith.constant 0 : index
    %4 = vector.load %arg3[%c0_3, %c0_4] : memref<1x256xf32, #tpu.memory_space<vmem>>, vector<1x256xf32>
    %5 = vector.broadcast %4 : vector<1x256xf32> to vector<8x256xf32>
    %6 = arith.addf %3, %5 : vector<8x256xf32>
    %cst_5 = arith.constant 2.000000e+01 : f32
    %7 = vector.broadcast %cst_5 : f32 to vector<8x256xf32>
    %8 = arith.minimumf %6, %7 : vector<8x256xf32>
    %9 = math.exp %8 : vector<8x256xf32>
    %cst_6 = arith.constant 2.000000e+00 : f32
    %10 = vector.broadcast %cst_6 : f32 to vector<8x256xf32>
    %11 = arith.addf %9, %10 : vector<8x256xf32>
    %12 = arith.mulf %9, %11 : vector<8x256xf32>
    %13 = arith.mulf %6, %12 : vector<8x256xf32>
    %cst_7 = arith.constant 2.000000e+00 : f32
    %14 = vector.broadcast %cst_7 : f32 to vector<8x256xf32>
    %15 = arith.addf %12, %14 : vector<8x256xf32>
    %16 = tpu.reciprocal %15 {approx = true} : vector<8x256xf32> -> vector<8x256xf32>
    %17 = arith.mulf %13, %16 : vector<8x256xf32>
    %18 = arith.truncf %17 : vector<8x256xf32> to vector<8x256xbf16>
    %c0_8 = arith.constant 0 : index
    %c0_9 = arith.constant 0 : index
    %19 = vector.load %arg4[%c0_8, %c0_9] : memref<256x128xbf16, #tpu.memory_space<vmem>>, vector<256x128xbf16>
    %cst_10 = arith.constant dense<0.000000e+00> : vector<8x128xf32>
    %20 = tpu.matmul %18, %19, %cst_10 {dimension_numbers = #tpu.dot_dimension_numbers<[1], [0], [0], [1], [0, 0, 1, 1], [], []>} : vector<8x256xbf16>, vector<256x128xbf16>, vector<8x128xf32> -> vector<8x128xf32>
    %c0_11 = arith.constant 0 : index
    %c0_12 = arith.constant 0 : index
    %21 = vector.load %arg5[%c0_11, %c0_12] : memref<1x128xf32, #tpu.memory_space<vmem>>, vector<1x128xf32>
    %22 = vector.broadcast %21 : vector<1x128xf32> to vector<8x128xf32>
    %23 = arith.addf %20, %22 : vector<8x128xf32>
    %c0_13 = arith.constant 0 : index
    %c0_14 = arith.constant 0 : index
    %24 = vector.load %arg6[%c0_13, %c0_14] : memref<8x128xf32, #tpu.memory_space<vmem>>, vector<8x128xf32>
    tpu.vector_store %arg6[%c0_13, %c0_14], %23 {strides = array<i32>} : memref<8x128xf32, #tpu.memory_space<vmem>>, vector<8x128xf32>,
    return
  }
  func.func @transform_0(%arg0: i32) -> (i32, i32) {
    %c0_i32 = arith.constant 0 : i32
    %c0_i32_0 = arith.constant 0 : i32
    return %arg0, %c0_i32 : i32, i32
  }
  func.func @transform_1(%arg0: i32) -> (i32, i32) {
    %c0_i32 = arith.constant 0 : i32
    %c0_i32_0 = arith.constant 0 : i32
    %c0_i32_1 = arith.constant 0 : i32
    return %c0_i32, %c0_i32_0 : i32, i32
  }
  func.func @transform_2(%arg0: i32) -> (i32, i32) {
    %c0_i32 = arith.constant 0 : i32
    %c0_i32_0 = arith.constant 0 : i32
    %c0_i32_1 = arith.constant 0 : i32
    return %c0_i32, %c0_i32_0 : i32, i32
  }
  func.func @transform_3(%arg0: i32) -> (i32, i32) {
    %c0_i32 = arith.constant 0 : i32
    %c0_i32_0 = arith.constant 0 : i32
    %c0_i32_1 = arith.constant 0 : i32
    return %c0_i32, %c0_i32_0 : i32, i32
  }
  func.func @transform_4(%arg0: i32) -> (i32, i32) {
    %c0_i32 = arith.constant 0 : i32
    %c0_i32_0 = arith.constant 0 : i32
    %c0_i32_1 = arith.constant 0 : i32
    return %c0_i32, %c0_i32_0 : i32, i32
  }
  func.func @transform_5(%arg0: i32) -> (i32, i32) {
    %c0_i32 = arith.constant 0 : i32
    %c0_i32_0 = arith.constant 0 : i32
    return %arg0, %c0_i32 : i32, i32
  }
}

</mosaic_0001>

<llo_original>
// kernel: tpu_custom_call.1
$region0: #{tpu_custom_call.1}
  #allocation0 [shape = 'u32[]', space=smem, size = 0x4, offset = 0x4, fixed_abs, tag = 'smem constant byte address 0x4 - core index']
  #allocation1 [shape = 'u32[72,128]{1,0:T(1,128)}', space=vmem, size = 0x9000, scoped, tag = 'internal scratch']
  %s0 = inlined_call_operand.hbm [shape: f32[8,2048], index: 0, kind: input, shape index: {}]
  %s1 = inlined_call_operand.hbm [shape: bf16[256,256], index: 1, kind: input, shape index: {}]
  %s2 = inlined_call_operand.hbm [shape: f32[1,256], index: 2, kind: input, shape index: {}]
  %s3 = inlined_call_operand.hbm [shape: bf16[256,128], index: 3, kind: input, shape index: {}]
  %s4 = inlined_call_operand.vmem [shape: f32[1,128], index: 4, kind: input, shape index: {}]
  %s5 = inlined_call_operand.hbm [shape: f32[8,128], index: 5, kind: output, shape index: {}]
  %s6 = sld [smem:[#allocation0]]
  $region46: #{tpu_custom_call.1} parent=0
    _
  %s8 = ssub.s32 1, %s6
  %s9 = scalar_select 0, %s8, %s6
  $region1: #{tpu_custom_call.1} parent=0
    #allocation2 [shape = 'u8[8192]{0}', space=vmem, size = 0x2000, scoped, tag = 'input window, operand 0, single buffered']
    #allocation3 [shape = 's32[1]{0}', space=sflag, size = 0x4, scoped, tag = 'scoped memory for tpu_custom_call.1']
    #allocation4 [shape = 's32[1]{0}', space=sflag, size = 0x4, scoped, tag = 'scoped memory for tpu_custom_call.1']
    #allocation5 [shape = 'u8[131072]{0}', space=vmem, size = 0x20000, scoped, tag = 'input window, operand 1, single buffered']
    #allocation6 [shape = 's32[1]{0}', space=sflag, size = 0x4, scoped, tag = 'scoped memory for tpu_custom_call.1']
    #allocation7 [shape = 'u8[1024]{0}', space=vmem, size = 0x400, scoped, tag = 'input window, operand 2, single buffered']
    #allocation8 [shape = 'u8[65536]{0}', space=vmem, size = 0x10000, scoped, tag = 'input window, operand 3, single buffered']
    #allocation9 [shape = 's32[1]{0}', space=sflag, size = 0x4, scoped, tag = 'scoped memory for tpu_custom_call.1']
    #allocation10 [shape = 'u8[4096]{0}', space=vmem, size = 0x1000, scoped, tag = 'output window, operand 0, single buffered']
    %10 = vsyncpa [#allocation3], 0
    %11 = vsyncpa [#allocation6], 0
    %12 = vsyncpa [#allocation9], 0
    %13 = vsyncpa [#allocation4], 0
    // Predicated region
    $region2: #{tpu_custom_call.1} parent=1 // pred_check
      _
    $region3: #{tpu_custom_call.1} parent=1 // pred_check_branch
      %15 = sbr.rel (0) target = $region5
    $region4: #{tpu_custom_call.1} parent=1 // pred_region
      %17 = vsyncadd [#allocation3], 0
      %s19 = sshll.u32 %s0, 4
      %s20 = int_to_ptr.hbm [resolvable:$true] %s19
      %s21 = sshll.u32 [#allocation2], 4
      %s22 = int_to_ptr.vmem [resolvable:$true] %s21
      %24 = dma.hbm_to_vmem [thread:$0]  %s20, 256, %s22, [#allocation3]
    $region5: #{tpu_custom_call.1} parent=1 // pred_fallthru
      _
    // Predicated region
    $region6: #{tpu_custom_call.1} parent=1 // pred_check
      _
    $region7: #{tpu_custom_call.1} parent=1 // pred_check_branch
      %26 = sbr.rel (0) target = $region9
    $region8: #{tpu_custom_call.1} parent=1 // pred_region
      %28 = vsyncadd [#allocation6], 0
      %s29 = sshll.u32 %s1, 4
      %s30 = int_to_ptr.hbm [resolvable:$true] %s29
      %s31 = sshll.u32 [#allocation5], 4
      %s32 = int_to_ptr.vmem [resolvable:$true] %s31
      %37 = dma.hbm_to_vmem [thread:$0]  %s30, 4096, %s32, [#allocation6], 128, 128, 8
    $region9: #{tpu_custom_call.1} parent=1 // pred_fallthru
      _
    // Predicated region
    $region10: #{tpu_custom_call.1} parent=1 // pred_check
      _
    $region11: #{tpu_custom_call.1} parent=1 // pred_check_branch
      %39 = sbr.rel (0) target = $region13
    $region12: #{tpu_custom_call.1} parent=1 // pred_region
      %41 = vsyncadd [#allocation6], 0
      %s43 = sshll.u32 %s2, 4
      %s44 = int_to_ptr.hbm [resolvable:$true] %s43
      %s45 = sshll.u32 [#allocation7], 4
      %s46 = int_to_ptr.vmem [resolvable:$true] %s45
      %48 = dma.hbm_to_vmem [thread:$0]  %s44, 32, %s46, [#allocation6]
    $region13: #{tpu_custom_call.1} parent=1 // pred_fallthru
      _
    // Predicated region
    $region14: #{tpu_custom_call.1} parent=1 // pred_check
      _
    $region15: #{tpu_custom_call.1} parent=1 // pred_check_branch
      %50 = sbr.rel (0) target = $region17
    $region16: #{tpu_custom_call.1} parent=1 // pred_region
      %52 = vsyncadd [#allocation9], 0
      %s53 = sshll.u32 %s3, 4
      %s54 = int_to_ptr.hbm [resolvable:$true] %s53
      %s55 = sshll.u32 [#allocation8], 4
      %s56 = int_to_ptr.vmem [resolvable:$true] %s55
      %61 = dma.hbm_to_vmem [thread:$0]  %s54, 2048, %s56, [#allocation9], 64, 64, 4
    $region17: #{tpu_custom_call.1} parent=1 // pred_fallthru
      _
    // Predicated region
    $region18: #{tpu_custom_call.1} parent=1 // pred_check
      _
    $region19: #{tpu_custom_call.1} parent=1 // pred_check_branch
      %63 = sbr.rel (0) target = $region21
    $region20: #{tpu_custom_call.1} parent=1 // pred_region
      _
    $region21: #{tpu_custom_call.1} parent=1 // pred_fallthru
      _
    // Predicated region
    $region22: #{tpu_custom_call.1} parent=1 // pred_check
      _
    $region23: #{tpu_custom_call.1} parent=1 // pred_check_branch
      %65 = sbr.rel (0) target = $region25
    $region24: #{tpu_custom_call.1} parent=1 // pred_region
      %67 = dma.done [#allocation3], 256
    $region25: #{tpu_custom_call.1} parent=1 // pred_fallthru
      _
    // Predicated region
    $region26: #{tpu_custom_call.1} parent=1 // pred_check
      _
    $region27: #{tpu_custom_call.1} parent=1 // pred_check_branch
      %69 = sbr.rel (0) target = $region29
    $region28: #{tpu_custom_call.1} parent=1 // pred_region
      %71 = dma.done [#allocation6], 4096
    $region29: #{tpu_custom_call.1} parent=1 // pred_fallthru
      _
    // Predicated region
    $region30: #{tpu_custom_call.1} parent=1 // pred_check
      _
    $region31: #{tpu_custom_call.1} parent=1 // pred_check_branch
      %73 = sbr.rel (0) target = $region33
    $region32: #{tpu_custom_call.1} parent=1 // pred_region
      %75 = dma.done [#allocation6], 32
    $region33: #{tpu_custom_call.1} parent=1 // pred_fallthru
      _
    // Predicated region
    $region34: #{tpu_custom_call.1} parent=1 // pred_check
      _
    $region35: #{tpu_custom_call.1} parent=1 // pred_check_branch
      %77 = sbr.rel (0) target = $region37
    $region36: #{tpu_custom_call.1} parent=1 // pred_region
      %79 = dma.done [#allocation9], 2048
    $region37: #{tpu_custom_call.1} parent=1 // pred_fallthru
      _
    %v80 = vld [vmem:[#allocation2] sm:$0xff]
    %v81 = vld [vmem:[#allocation2 + $0x8] sm:$0xff]
    %v82 = vpack.c.bf16 %v80, %v80
    %v83 = vpack.c.bf16 %v81, %v81
    %v84 = vld [vmem:[#allocation5] sm:$0xff]
    %v85 = vld [vmem:[#allocation5 + $0x8] sm:$0xff]
    %v86 = vld [vmem:[#allocation5 + $0x10] sm:$0xff]
    %v87 = vld [vmem:[#allocation5 + $0x18] sm:$0xff]
    %v88 = vld [vmem:[#allocation5 + $0x20] sm:$0xff]
    %v89 = vld [vmem:[#allocation5 + $0x28] sm:$0xff]
    %v90 = vld [vmem:[#allocation5 + $0x30] sm:$0xff]
    %v91 = vld [vmem:[#allocation5 + $0x38] sm:$0xff]
    %v92 = vld [vmem:[#allocation5 + $0x40] sm:$0xff]
    %v93 = vld [vmem:[#allocation5 + $0x48] sm:$0xff]
    %v94 = vld [vmem:[#allocation5 + $0x50] sm:$0xff]
    %v95 = vld [vmem:[#allocation5 + $0x58] sm:$0xff]
    %v96 = vld [vmem:[#allocation5 + $0x60] sm:$0xff]
    %v97 = vld [vmem:[#allocation5 + $0x68] sm:$0xff]
    %v98 = vld [vmem:[#allocation5 + $0x70] sm:$0xff]
    %v99 = vld [vmem:[#allocation5 + $0x78] sm:$0xff]
    %v100 = vld [vmem:[#allocation5 + $0x80] sm:$0xff]
    %v101 = vld [vmem:[#allocation5 + $0x88] sm:$0xff]
    %v102 = vld [vmem:[#allocation5 + $0x90] sm:$0xff]
    %v103 = vld [vmem:[#allocation5 + $0x98] sm:$0xff]
    %v104 = vld [vmem:[#allocation5 + $0xa0] sm:$0xff]
    %v105 = vld [vmem:[#allocation5 + $0xa8] sm:$0xff]
    %v106 = vld [vmem:[#allocation5 + $0xb0] sm:$0xff]
    %v107 = vld [vmem:[#allocation5 + $0xb8] sm:$0xff]
    %v108 = vld [vmem:[#allocation5 + $0xc0] sm:$0xff]
    %v109 = vld [vmem:[#allocation5 + $0xc8] sm:$0xff]
    %v110 = vld [vmem:[#allocation5 + $0xd0] sm:$0xff]
    %v111 = vld [vmem:[#allocation5 + $0xd8] sm:$0xff]
    %v112 = vld [vmem:[#allocation5 + $0xe0] sm:$0xff]
    %v113 = vld [vmem:[#allocation5 + $0xe8] sm:$0xff]
    %v114 = vld [vmem:[#allocation5 + $0xf0] sm:$0xff]
    %v115 = vld [vmem:[#allocation5 + $0xf8] sm:$0xff]
    %v116 = vld [vmem:[#allocation7] sm:$0x3]
    %v118 = vperm.slane %v116, 0
    %v119 = vperm.slane %v116, 1
    %v154 = vunpack.c.l.b16 %v84
    %v155 = vunpack.c.h.b16 %v84
    %v156 = vunpack.c.l.b16 %v85
    %v157 = vunpack.c.h.b16 %v85
    %v158 = vunpack.c.l.b16 %v86
    %v159 = vunpack.c.h.b16 %v86
    %v160 = vunpack.c.l.b16 %v87
    %v161 = vunpack.c.h.b16 %v87
    %v162 = vunpack.c.l.b16 %v88
    %v163 = vunpack.c.h.b16 %v88
    %v164 = vunpack.c.l.b16 %v89
    %v165 = vunpack.c.h.b16 %v89
    %v166 = vunpack.c.l.b16 %v90
    %v167 = vunpack.c.h.b16 %v90
    %v168 = vunpack.c.l.b16 %v91
    %v169 = vunpack.c.h.b16 %v91
    %v170 = vunpack.c.l.b16 %v92
    %v171 = vunpack.c.h.b16 %v92
    %v172 = vunpack.c.l.b16 %v93
    %v173 = vunpack.c.h.b16 %v93
    %v174 = vunpack.c.l.b16 %v94
    %v175 = vunpack.c.h.b16 %v94
    %v176 = vunpack.c.l.b16 %v95
    %v177 = vunpack.c.h.b16 %v95
    %v178 = vunpack.c.l.b16 %v96
    %v179 = vunpack.c.h.b16 %v96
    %v180 = vunpack.c.l.b16 %v97
    %v181 = vunpack.c.h.b16 %v97
    %v182 = vunpack.c.l.b16 %v98
    %v183 = vunpack.c.h.b16 %v98
    %v184 = vunpack.c.l.b16 %v99
    %v185 = vunpack.c.h.b16 %v99
    %v186 = vunpack.c.l.b16 %v100
    %v187 = vunpack.c.h.b16 %v100
    %v188 = vunpack.c.l.b16 %v101
    %v189 = vunpack.c.h.b16 %v101
    %v190 = vunpack.c.l.b16 %v102
    %v191 = vunpack.c.h.b16 %v102
    %v192 = vunpack.c.l.b16 %v103
    %v193 = vunpack.c.h.b16 %v103
    %v194 = vunpack.c.l.b16 %v104
    %v195 = vunpack.c.h.b16 %v104
    %v196 = vunpack.c.l.b16 %v105
    %v197 = vunpack.c.h.b16 %v105
    %v198 = vunpack.c.l.b16 %v106
    %v199 = vunpack.c.h.b16 %v106
    %v200 = vunpack.c.l.b16 %v107
    %v201 = vunpack.c.h.b16 %v107
    %v202 = vunpack.c.l.b16 %v108
    %v203 = vunpack.c.h.b16 %v108
    %v204 = vunpack.c.l.b16 %v109
    %v205 = vunpack.c.h.b16 %v109
    %v206 = vunpack.c.l.b16 %v110
    %v207 = vunpack.c.h.b16 %v110
    %v208 = vunpack.c.l.b16 %v111
    %v209 = vunpack.c.h.b16 %v111
    %v210 = vunpack.c.l.b16 %v112
    %v211 = vunpack.c.h.b16 %v112
    %v212 = vunpack.c.l.b16 %v113
    %v213 = vunpack.c.h.b16 %v113
    %v214 = vunpack.c.l.b16 %v114
    %v215 = vunpack.c.h.b16 %v114
    %v216 = vunpack.c.l.b16 %v115
    %v217 = vunpack.c.h.b16 %v115
    %v218 = vpack.c.b16 %v156, %v154
    %v219 = vpack.c.b16 %v157, %v155
    %v220 = vpack.c.b16 %v160, %v158
    %v221 = vpack.c.b16 %v161, %v159
    %v222 = vpack.c.b16 %v164, %v162
    %v223 = vpack.c.b16 %v165, %v163
    %v224 = vpack.c.b16 %v168, %v166
    %v225 = vpack.c.b16 %v169, %v167
    %v226 = vpack.c.b16 %v172, %v170
    %v227 = vpack.c.b16 %v173, %v171
    %v228 = vpack.c.b16 %v176, %v174
    %v229 = vpack.c.b16 %v177, %v175
    %v230 = vpack.c.b16 %v180, %v178
    %v231 = vpack.c.b16 %v181, %v179
    %v232 = vpack.c.b16 %v184, %v182
    %v233 = vpack.c.b16 %v185, %v183
    %v234 = vpack.c.b16 %v188, %v186
    %v235 = vpack.c.b16 %v189, %v187
    %v236 = vpack.c.b16 %v192, %v190
    %v237 = vpack.c.b16 %v193, %v191
    %v238 = vpack.c.b16 %v196, %v194
    %v239 = vpack.c.b16 %v197, %v195
    %v240 = vpack.c.b16 %v200, %v198
    %v241 = vpack.c.b16 %v201, %v199
    %v242 = vpack.c.b16 %v204, %v202
    %v243 = vpack.c.b16 %v205, %v203
    %v244 = vpack.c.b16 %v208, %v206
    %v245 = vpack.c.b16 %v209, %v207
    %v246 = vpack.c.b16 %v212, %v210
    %v247 = vpack.c.b16 %v213, %v211
    %v248 = vpack.c.b16 %v216, %v214
    %v249 = vpack.c.b16 %v217, %v215
    %282 = vmatpush.bf16.msra.mxu0 %v232
    %283 = vmatpush.bf16.msra.mxu0 %v230
    %284 = vmatpush.bf16.msra.mxu0 %v228
    %285 = vmatpush.bf16.msra.mxu0 %v226
    %286 = vmatpush.bf16.msra.mxu0 %v224
    %287 = vmatpush.bf16.msra.mxu0 %v222
    %288 = vmatpush.bf16.msra.mxu0 %v220
    %289 = vmatpush.bf16.msra.mxu0 %v218
    %290 = vmatmul.bf16.gmra.mxu0 %v82
    %v291 = vpop.f32.mrf.mxu0
    %v292 = vadd.f32 %v118, %v291
    %v293 = vpop.f32.mrf.mxu0
    %294 = vdwg.mxu0
    %295 = vmatpush.bf16.msra.mxu0 %v248
    %296 = vmatpush.bf16.msra.mxu0 %v246
    %297 = vmatpush.bf16.msra.mxu0 %v244
    %298 = vmatpush.bf16.msra.mxu0 %v242
    %299 = vmatpush.bf16.msra.mxu0 %v240
    %300 = vmatpush.bf16.msra.mxu0 %v238
    %301 = vmatpush.bf16.msra.mxu0 %v236
    %302 = vmatpush.bf16.msra.mxu0 %v234
    %303 = vmatmul.bf16.gmra.mxu0 %v83
    %v304 = vpop.f32.mrf.mxu0
    %v305 = vadd.f32 %v292, %v304
    %v306 = vpop.f32.mrf.mxu0
    %307 = vdwg.mxu0
    %308 = vmatpush.bf16.msra.mxu0 %v233
    %309 = vmatpush.bf16.msra.mxu0 %v231
    %310 = vmatpush.bf16.msra.mxu0 %v229
    %311 = vmatpush.bf16.msra.mxu0 %v227
    %312 = vmatpush.bf16.msra.mxu0 %v225
    %313 = vmatpush.bf16.msra.mxu0 %v223
    %314 = vmatpush.bf16.msra.mxu0 %v221
    %315 = vmatpush.bf16.msra.mxu0 %v219
    %316 = vmatmul.bf16.gmra.mxu0 %v82
    %v317 = vpop.f32.mrf.mxu0
    %v318 = vadd.f32 %v119, %v317
    %v319 = vpop.f32.mrf.mxu0
    %320 = vdwg.mxu0
    %321 = vmatpush.bf16.msra.mxu0 %v249
    %322 = vmatpush.bf16.msra.mxu0 %v247
    %323 = vmatpush.bf16.msra.mxu0 %v245
    %324 = vmatpush.bf16.msra.mxu0 %v243
    %325 = vmatpush.bf16.msra.mxu0 %v241
    %326 = vmatpush.bf16.msra.mxu0 %v239
    %327 = vmatpush.bf16.msra.mxu0 %v237
    %328 = vmatpush.bf16.msra.mxu0 %v235
    %329 = vmatmul.bf16.gmra.mxu0 %v83
    %v330 = vpop.f32.mrf.mxu0
    %v331 = vadd.f32 %v318, %v330
    %v332 = vpop.f32.mrf.mxu0
    %333 = vdwg.mxu0
    %v334 = vmin.f32 %v305, 20.0
    %v335 = vmin.f32 %v331, 20.0
    %v336 = vmul.f32 %v334, 1.442695
    %v337 = vpow.pop %v336
    %v338 = vmul.f32 %v335, 1.442695
    %v339 = vpow.pop %v338
    %v340 = vadd.f32 %v337, 2.0
    %v341 = vadd.f32 %v339, 2.0
    %v342 = vmul.f32 %v337, %v340
    %v343 = vmul.f32 %v339, %v341
    %v344 = vmul.f32 %v305, %v342
    %v345 = vmul.f32 %v331, %v343
    %v346 = vadd.f32 %v342, 2.0
    %v347 = vadd.f32 %v343, 2.0
    %v348 = vrcp.pop %v346
    %v349 = vrcp.pop %v347
    %v350 = vmul.f32 %v344, %v348
    %v351 = vmul.f32 %v345, %v349
    %v352 = vpack.c.bf16 %v350, %v350
    %v353 = vpack.c.bf16 %v351, %v351
    %v354 = vld [vmem:[#allocation8] sm:$0xf]
    %v355 = vld [vmem:[#allocation8 + $0x4] sm:$0xf]
    %v356 = vld [vmem:[#allocation8 + $0x8] sm:$0xf]
    %v357 = vld [vmem:[#allocation8 + $0xc] sm:$0xf]
    %v358 = vld [vmem:[#allocation8 + $0x10] sm:$0xf]
    %v359 = vld [vmem:[#allocation8 + $0x14] sm:$0xf]
    %v360 = vld [vmem:[#allocation8 + $0x18] sm:$0xf]
    %v361 = vld [vmem:[#allocation8 + $0x1c] sm:$0xf]
    %v362 = vld [vmem:[#allocation8 + $0x20] sm:$0xf]
    %v363 = vld [vmem:[#allocation8 + $0x24] sm:$0xf]
    %v364 = vld [vmem:[#allocation8 + $0x28] sm:$0xf]
    %v365 = vld [vmem:[#allocation8 + $0x2c] sm:$0xf]
    %v366 = vld [vmem:[#allocation8 + $0x30] sm:$0xf]
    %v367 = vld [vmem:[#allocation8 + $0x34] sm:$0xf]
    %v368 = vld [vmem:[#allocation8 + $0x38] sm:$0xf]
    %v369 = vld [vmem:[#allocation8 + $0x3c] sm:$0xf]
    %v370 = vld [vmem:[#allocation8 + $0x40] sm:$0xf]
    %v371 = vld [vmem:[#allocation8 + $0x44] sm:$0xf]
    %v372 = vld [vmem:[#allocation8 + $0x48] sm:$0xf]
    %v373 = vld [vmem:[#allocation8 + $0x4c] sm:$0xf]
    %v374 = vld [vmem:[#allocation8 + $0x50] sm:$0xf]
    %v375 = vld [vmem:[#allocation8 + $0x54] sm:$0xf]
    %v376 = vld [vmem:[#allocation8 + $0x58] sm:$0xf]
    %v377 = vld [vmem:[#allocation8 + $0x5c] sm:$0xf]
    %v378 = vld [vmem:[#allocation8 + $0x60] sm:$0xf]
    %v379 = vld [vmem:[#allocation8 + $0x64] sm:$0xf]
    %v380 = vld [vmem:[#allocation8 + $0x68] sm:$0xf]
    %v381 = vld [vmem:[#allocation8 + $0x6c] sm:$0xf]
    %v382 = vld [vmem:[#allocation8 + $0x70] sm:$0xf]
    %v383 = vld [vmem:[#allocation8 + $0x74] sm:$0xf]
    %v384 = vld [vmem:[#allocation8 + $0x78] sm:$0xf]
    %v385 = vld [vmem:[#allocation8 + $0x7c] sm:$0xf]
    %v386 = vld [vmem:[%s4] sm:$0x1]
    %v388 = vperm.slane %v386, 0
    %v422 = vunpack.c.l.b16 %v354
    %v423 = vunpack.c.l.b16 %v355
    %v424 = vunpack.c.l.b16 %v356
    %v425 = vunpack.c.l.b16 %v357
    %v426 = vunpack.c.l.b16 %v358
    %v427 = vunpack.c.l.b16 %v359
    %v428 = vunpack.c.l.b16 %v360
    %v429 = vunpack.c.l.b16 %v361
    %v430 = vunpack.c.l.b16 %v362
    %v431 = vunpack.c.l.b16 %v363
    %v432 = vunpack.c.l.b16 %v364
    %v433 = vunpack.c.l.b16 %v365
    %v434 = vunpack.c.l.b16 %v366
    %v435 = vunpack.c.l.b16 %v367
    %v436 = vunpack.c.l.b16 %v368
    %v437 = vunpack.c.l.b16 %v369
    %v438 = vunpack.c.l.b16 %v370
    %v439 = vunpack.c.l.b16 %v371
    %v440 = vunpack.c.l.b16 %v372
    %v441 = vunpack.c.l.b16 %v373
    %v442 = vunpack.c.l.b16 %v374
    %v443 = vunpack.c.l.b16 %v375
    %v444 = vunpack.c.l.b16 %v376
    %v445 = vunpack.c.l.b16 %v377
    %v446 = vunpack.c.l.b16 %v378
    %v447 = vunpack.c.l.b16 %v379
    %v448 = vunpack.c.l.b16 %v380
    %v449 = vunpack.c.l.b16 %v381
    %v450 = vunpack.c.l.b16 %v382
    %v451 = vunpack.c.l.b16 %v383
    %v452 = vunpack.c.l.b16 %v384
    %v453 = vunpack.c.l.b16 %v385
    %v454 = vpack.c.b16 %v423, %v422
    %v455 = vpack.c.b16 %v425, %v424
    %v456 = vpack.c.b16 %v427, %v426
    %v457 = vpack.c.b16 %v429, %v428
    %v458 = vpack.c.b16 %v431, %v430
    %v459 = vpack.c.b16 %v433, %v432
    %v460 = vpack.c.b16 %v435, %v434
    %v461 = vpack.c.b16 %v437, %v436
    %v462 = vpack.c.b16 %v439, %v438
    %v463 = vpack.c.b16 %v441, %v440
    %v464 = vpack.c.b16 %v443, %v442
    %v465 = vpack.c.b16 %v445, %v444
    %v466 = vpack.c.b16 %v447, %v446
    %v467 = vpack.c.b16 %v449, %v448
    %v468 = vpack.c.b16 %v451, %v450
    %v469 = vpack.c.b16 %v453, %v452
    %486 = vmatpush.bf16.msra.mxu0 %v461
    %487 = vmatpush.bf16.msra.mxu0 %v460
    %488 = vmatpush.bf16.msra.mxu0 %v459
    %489 = vmatpush.bf16.msra.mxu0 %v458
    %490 = vmatpush.bf16.msra.mxu0 %v457
    %491 = vmatpush.bf16.msra.mxu0 %v456
    %492 = vmatpush.bf16.msra.mxu0 %v455
    %493 = vmatpush.bf16.msra.mxu0 %v454
    %494 = vmatmul.bf16.gmra.mxu0 %v352
    %v495 = vpop.f32.mrf.mxu0
    %v496 = vadd.f32 %v388, %v495
    %v497 = vpop.f32.mrf.mxu0
    %498 = vdwg.mxu0
    %499 = vmatpush.bf16.msra.mxu0 %v469
    %500 = vmatpush.bf16.msra.mxu0 %v468
    %501 = vmatpush.bf16.msra.mxu0 %v467
    %502 = vmatpush.bf16.msra.mxu0 %v466
    %503 = vmatpush.bf16.msra.mxu0 %v465
    %504 = vmatpush.bf16.msra.mxu0 %v464
    %505 = vmatpush.bf16.msra.mxu0 %v463
    %506 = vmatpush.bf16.msra.mxu0 %v462
    %507 = vmatmul.bf16.gmra.mxu0 %v353
    %v508 = vpop.f32.mrf.mxu0
    %v509 = vadd.f32 %v496, %v508
    %v510 = vpop.f32.mrf.mxu0
    %511 = vdwg.mxu0
    %512 = vst [vmem:[#allocation10] sm:$0xff] %v509
    // Predicated region
    $region38: #{tpu_custom_call.1} parent=1 // pred_check
      _
    $region39: #{tpu_custom_call.1} parent=1 // pred_check_branch
      %514 = sbr.rel (0) target = $region41
    $region40: #{tpu_custom_call.1} parent=1 // pred_region
      %516 = vsyncadd [#allocation4], 0
      %s518 = sshll.u32 [#allocation10], 4
      %s519 = int_to_ptr.vmem [resolvable:$true] %s518
      %s520 = sshll.u32 %s5, 4
      %s521 = int_to_ptr.hbm [resolvable:$true] %s520
      %523 = dma.vmem_to_hbm [thread:$0]  %s519, 128, %s521, [#allocation4]
    $region41: #{tpu_custom_call.1} parent=1 // pred_fallthru
      _
    // Predicated region
    $region42: #{tpu_custom_call.1} parent=1 // pred_check
      _
    $region43: #{tpu_custom_call.1} parent=1 // pred_check_branch
      %525 = sbr.rel (0) target = $region45
    $region44: #{tpu_custom_call.1} parent=1 // pred_region
      %527 = dma.done [#allocation4], 128
    $region45: #{tpu_custom_call.1} parent=1 // pred_fallthru
      _
    %528 = vsyncpa [#allocation3], 1
    %529 = vsyncpa [#allocation6], 1
    %530 = vsyncpa [#allocation9], 1
    %531 = vsyncpa [#allocation4], 1

</llo_original>
